<compile_context>
chip_gen: v7x
topology: tpu7x:2x2x1
jax: 0.10.0
libtpu: 0.0.40
codegen_flags: <defaults>
</compile_context>

<pallas_src>
import functools

import jax
import jax.numpy as jnp
from jax.experimental import pallas as pl
from jax.experimental.pallas import tpu as pltpu


# --------------------------------------------------------------------------
# VMEM budgeting / tile selection
# --------------------------------------------------------------------------
def _vmem_budget():
    """Scoped-VMEM limit sized for the current chip generation."""
    try:
        cap = int(pltpu.get_tpu_info().vmem_capacity_bytes)
    except Exception:
        cap = 64 * 1024 * 1024          # conservative: v7x per-core VMEM
    # 3/4 of physical, capped at 96 MiB (v5e/v6e: 96 MiB, v7x: 48 MiB).
    return min(cap * 3 // 4, 96 * 1024 * 1024)


def _pick_tiles(rows, cols, itemsize, block_bytes):
    """Pick (row_tile, col_tile) for a (rows, cols) array so one block is
    ~block_bytes, respecting the TPU (8, 128) layout constraint.  Grids use
    pl.cdiv, so the tiles need not divide the array dims."""
    # Lane (minor) tile: multiple of 128, or the full dimension.
    max_tc = max(128, block_bytes // (8 * itemsize))
    if cols <= max_tc or cols % 128 != 0:
        tc = cols                       # full minor dim (required if not 128-mult)
    else:
        tc = (max_tc // 128) * 128
    # Sublane (row) tile: multiple of 8, or the full dimension.
    max_tr = max(8, block_bytes // (tc * itemsize))
    if rows <= max_tr:
        tr = rows
    else:
        tr = (max_tr // 8) * 8
    return tr, tc


# --------------------------------------------------------------------------
# Kernel 1: per-row (= per (n, c)) sum and sum-of-squares over the HW lanes.
# x2d: (N*C, HW); outputs: (N*C, 1) float32 accumulators (accumulated over
# the column/"arbitrary" grid axis).
# --------------------------------------------------------------------------
def _reduce_kernel(x_ref, sum_ref, sq_ref, *, valid_cols, mask_cols):
    j = pl.program_id(1)

    @pl.when(j == 0)
    def _():
        sum_ref[...] = jnp.zeros_like(sum_ref)
        sq_ref[...] = jnp.zeros_like(sq_ref)

    xf = x_ref[...].astype(jnp.float32)
    if mask_cols:  # static: only emitted when HW % col_tile != 0
        tc = x_ref.shape[1]
        col = jax.lax.broadcasted_iota(jnp.int32, (1, tc), 1) + j * tc
        xf = jnp.where(col < valid_cols, xf, 0.0)
    sum_ref[...] += jnp.sum(xf, axis=1, keepdims=True)
    sq_ref[...] += jnp.sum(xf * xf, axis=1, keepdims=True)


# --------------------------------------------------------------------------
# Kernel 2: fused normalize.  scale/shift (rsqrt + gain/bias fold) computed
# in-kernel from per-row f32 stats; broadcast along the HW lane axis.
# --------------------------------------------------------------------------
def _norm_kernel(x_ref, mean_ref, var_ref, gain_ref, bias_ref, o_ref, *, eps):
    var = jnp.maximum(var_ref[...], 0.0)            # guard E[x^2]-E[x]^2 < 0
    scale = jax.lax.rsqrt(var + eps) * gain_ref[...]    # (tr, 1) f32
    shift = mean_ref[...] * scale - bias_ref[...]        # (tr, 1) f32
    xf = x_ref[...].astype(jnp.float32)
    o_ref[...] = (xf * scale - shift).astype(o_ref.dtype)


@functools.partial(jax.jit, static_argnames=("eps", "momentum"))
def my_bn_forward(x, gain, bias, stored_mean, stored_var,
                  eps=1e-5, momentum=0.1):
    """Training-mode forward of myBN.

    x:    (N, C, H, W)             NCHW, as in PyTorch
    gain: (1 or N, C, 1, 1)
    bias: (1 or N, C, 1, 1)
    Returns (out_NCHW, new_stored_mean, new_stored_var).
    """
    N, C, H, W = x.shape
    HW = H * W
    NC = N * C
    itemsize = jnp.dtype(x.dtype).itemsize

    x2d = x.reshape(NC, HW)            # free view: no transpose, no copy
    vmem_limit = _vmem_budget()

    # ---------------- pass 1: per-row sum / sum-of-squares ----------------
    tr_r, tc_r = _pick_tiles(NC, HW, itemsize, vmem_limit // 3)
    mask_cols = (HW % tc_r) != 0

    row_sum, row_sq = pl.pallas_call(
        functools.partial(_reduce_kernel, valid_cols=HW, mask_cols=mask_cols),
        out_shape=(jax.ShapeDtypeStruct((NC, 1), jnp.float32),
                   jax.ShapeDtypeStruct((NC, 1), jnp.float32)),
        grid_spec=pltpu.PrefetchScalarGridSpec(
            num_scalar_prefetch=0,
            grid=(pl.cdiv(NC, tr_r), pl.cdiv(HW, tc_r)),
            in_specs=[pl.BlockSpec((tr_r, tc_r), lambda i, j: (i, j))],
            out_specs=[pl.BlockSpec((tr_r, 1), lambda i, j: (i, 0)),
                       pl.BlockSpec((tr_r, 1), lambda i, j: (i, 0))],
        ),
        compiler_params=pltpu.CompilerParams(
            dimension_semantics=("parallel", "arbitrary"),
            vmem_limit_bytes=vmem_limit),
    )(x2d)

    # Tiny per-channel combine over the batch (C-sized glue, negligible).
    cnt = jnp.float32(N * HW)
    mean_f32 = row_sum.reshape(N, C).sum(axis=0) / cnt            # (C,)
    var_f32 = row_sq.reshape(N, C).sum(axis=0) / cnt - mean_f32 * mean_f32

    # Per-(n, c) row parameters for the normalize kernel (tiny glue).
    gain_rows = jnp.broadcast_to(
        gain.reshape(gain.shape[0], C).astype(jnp.float32), (N, C)).reshape(NC, 1)
    bias_rows = jnp.broadcast_to(
        bias.reshape(bias.shape[0], C).astype(jnp.float32), (N, C)).reshape(NC, 1)
    mean_rows = jnp.broadcast_to(mean_f32[None, :], (N, C)).reshape(NC, 1)
    var_rows = jnp.broadcast_to(var_f32[None, :], (N, C)).reshape(NC, 1)

    # ---------------- pass 2: fused normalize ----------------
    tr_n, tc_n = _pick_tiles(NC, HW, itemsize, vmem_limit // 6)

    out2d = pl.pallas_call(
        functools.partial(_norm_kernel, eps=float(eps)),
        out_shape=jax.ShapeDtypeStruct((NC, HW), x.dtype),
        grid_spec=pltpu.PrefetchScalarGridSpec(
            num_scalar_prefetch=0,
            grid=(pl.cdiv(NC, tr_n), pl.cdiv(HW, tc_n)),
            in_specs=[pl.BlockSpec((tr_n, tc_n), lambda i, j: (i, j)),
                      pl.BlockSpec((tr_n, 1), lambda i, j: (i, 0)),
                      pl.BlockSpec((tr_n, 1), lambda i, j: (i, 0)),
                      pl.BlockSpec((tr_n, 1), lambda i, j: (i, 0)),
                      pl.BlockSpec((tr_n, 1), lambda i, j: (i, 0))],
            out_specs=pl.BlockSpec((tr_n, tc_n), lambda i, j: (i, j)),
        ),
        compiler_params=pltpu.CompilerParams(
            dimension_semantics=("parallel", "parallel"),
            vmem_limit_bytes=vmem_limit),
        # Note: pass input_output_aliases={0: 0} here when the caller donates x
        # (saves a full-tensor HBM allocation); left off since callers (and the
        # test below) typically still hold x.
    )(x2d, mean_rows, var_rows, gain_rows, bias_rows)

    out = out2d.reshape(N, C, H, W)    # free view back to NCHW

    # Running-stat update (accumulate_standing=False branch).  Stats are cast
    # to x.dtype first to mirror the PyTorch code.
    mean_s = mean_f32.astype(x.dtype)
    var_s = var_f32.astype(x.dtype)
    new_mean = stored_mean * (1.0 - momentum) + mean_s * momentum
    new_var = stored_var * (1.0 - momentum) + var_s * momentum
    return out, new_mean, new_var


def _reference(x, gain, bias, eps=1e-5):
    xf = x.astype(jnp.float32)
    m = jnp.mean(xf, axis=(0, 2, 3), keepdims=True)
    m2 = jnp.mean(xf * xf, axis=(0, 2, 3), keepdims=True)
    var = (m2 - m * m).astype(x.dtype)
    m = m.astype(x.dtype)
    scale = jax.lax.rsqrt(var + eps) * gain
    shift = m * scale - bias
    return x * scale - shift, m.squeeze(), var.squeeze()


if __name__ == "__main__":
    key = jax.random.PRNGKey(0)
    k1, k2, k3 = jax.random.split(key, 3)

    N, C, H, W = 2, 4, 16, 16
    x = jax.random.normal(k1, (N, C, H, W), dtype=jnp.float32)
    # gain/bias as passed by BigGAN's conditional BN: (1, C, 1, 1) here
    gain = 1.0 + 0.1 * jax.random.normal(k2, (1, C, 1, 1), dtype=jnp.float32)
    bias = 0.1 * jax.random.normal(k3, (1, C, 1, 1), dtype=jnp.float32)

    stored_mean = jnp.zeros((C,), dtype=jnp.float32)
    stored_var = jnp.ones((C,), dtype=jnp.float32)

    out, new_mean, new_var = my_bn_forward(x, gain, bias, stored_mean,
                                           stored_var, eps=1e-5, momentum=0.1)
    out = jax.block_until_ready(out)
    new_mean = jax.block_until_ready(new_mean)
    new_var = jax.block_until_ready(new_var)

    # cross-check against plain-JAX reference of the PyTorch math
    ref_out, ref_m, ref_v = _reference(x, gain, bias)
    assert jnp.allclose(out, ref_out, atol=1e-4, rtol=1e-4)
    assert jnp.allclose(new_mean, stored_mean * 0.9 + ref_m * 0.1, atol=1e-5)
    assert jnp.allclose(new_var, stored_var * 0.9 + ref_v * 0.1, atol=1e-5)

    print("KERNEL_OK")
</pallas_src>

<mosaic_0001>
module attributes {stable_mosaic.version = 11 : i64} {
  func.func @_reduce_kernel(%arg0: i32, %arg1: i32, %arg2: memref<8x256xf32, #tpu.memory_space<vmem>>, %arg3: memref<8x1xf32, #tpu.memory_space<vmem>>, %arg4: memref<8x1xf32, #tpu.memory_space<vmem>>) attributes {dimension_semantics = [#tpu.dimension_semantics<parallel>, #tpu.dimension_semantics<arbitrary>], iteration_bounds = array<i64: 1, 1>, scalar_prefetch = 0 : i64, scratch_operands = 0 : i64, tpu.core_type = #tpu.core_type<tc>, window_params = [{transform_indices = @transform_0, window_bounds = array<i64: 8, 256>}, {transform_indices = @transform_1, window_bounds = array<i64: 8, 1>}, {transform_indices = @transform_2, window_bounds = array<i64: 8, 1>}]} {
    %c0_i32 = arith.constant 0 : i32
    %0 = arith.cmpi eq, %arg1, %c0_i32 : i32
    %1 = arith.extui %0 : i1 to i32
    %c0_i32_0 = arith.constant 0 : i32
    %2 = arith.cmpi ne, %1, %c0_i32_0 : i32
    scf.if %2 {
      %cst_11 = arith.constant 0.000000e+00 : f32
      %15 = vector.broadcast %cst_11 : f32 to vector<8x1xf32>
      %c0_12 = arith.constant 0 : index
      %c0_13 = arith.constant 0 : index
      %16 = vector.load %arg3[%c0_12, %c0_13] : memref<8x1xf32, #tpu.memory_space<vmem>>, vector<8x1xf32>
      tpu.vector_store %arg3[%c0_12, %c0_13], %15 {strides = array<i32>} : memref<8x1xf32, #tpu.memory_space<vmem>>, vector<8x1xf32>,
      %cst_14 = arith.constant 0.000000e+00 : f32
      %17 = vector.broadcast %cst_14 : f32 to vector<8x1xf32>
      %c0_15 = arith.constant 0 : index
      %c0_16 = arith.constant 0 : index
      %18 = vector.load %arg4[%c0_15, %c0_16] : memref<8x1xf32, #tpu.memory_space<vmem>>, vector<8x1xf32>
      tpu.vector_store %arg4[%c0_15, %c0_16], %17 {strides = array<i32>} : memref<8x1xf32, #tpu.memory_space<vmem>>, vector<8x1xf32>,
    } else {
    }
    %c0 = arith.constant 0 : index
    %c0_1 = arith.constant 0 : index
    %3 = vector.load %arg2[%c0, %c0_1] : memref<8x256xf32, #tpu.memory_space<vmem>>, vector<8x256xf32>
    %c0_2 = arith.constant 0 : index
    %c0_3 = arith.constant 0 : index
    %4 = vector.load %arg3[%c0_2, %c0_3] : memref<8x1xf32, #tpu.memory_space<vmem>>, vector<8x1xf32>
    %cst = arith.constant dense<0.000000e+00> : vector<8xf32>
    %5 = vector.multi_reduction <add>, %3, %cst [1] : vector<8x256xf32> to vector<8xf32>
    %6 = vector.shape_cast %5 : vector<8xf32> to vector<8x1xf32>
    %7 = arith.addf %4, %6 : vector<8x1xf32>
    %c0_4 = arith.constant 0 : index
    %c0_5 = arith.constant 0 : index
    %8 = vector.load %arg3[%c0_4, %c0_5] : memref<8x1xf32, #tpu.memory_space<vmem>>, vector<8x1xf32>
    tpu.vector_store %arg3[%c0_4, %c0_5], %7 {strides = array<i32>} : memref<8x1xf32, #tpu.memory_space<vmem>>, vector<8x1xf32>,
    %c0_6 = arith.constant 0 : index
    %c0_7 = arith.constant 0 : index
    %9 = vector.load %arg4[%c0_6, %c0_7] : memref<8x1xf32, #tpu.memory_space<vmem>>, vector<8x1xf32>
    %10 = arith.mulf %3, %3 : vector<8x256xf32>
    %cst_8 = arith.constant dense<0.000000e+00> : vector<8xf32>
    %11 = vector.multi_reduction <add>, %10, %cst_8 [1] : vector<8x256xf32> to vector<8xf32>
    %12 = vector.shape_cast %11 : vector<8xf32> to vector<8x1xf32>
    %13 = arith.addf %9, %12 : vector<8x1xf32>
    %c0_9 = arith.constant 0 : index
    %c0_10 = arith.constant 0 : index
    %14 = vector.load %arg4[%c0_9, %c0_10] : memref<8x1xf32, #tpu.memory_space<vmem>>, vector<8x1xf32>
    tpu.vector_store %arg4[%c0_9, %c0_10], %13 {strides = array<i32>} : memref<8x1xf32, #tpu.memory_space<vmem>>, vector<8x1xf32>,
    return
  }
  func.func @transform_0(%arg0: i32, %arg1: i32) -> (i32, i32) {
    %c0_i32 = arith.constant 0 : i32
    return %arg0, %arg1 : i32, i32
  }
  func.func @transform_1(%arg0: i32, %arg1: i32) -> (i32, i32) {
    %c0_i32 = arith.constant 0 : i32
    %c0_i32_0 = arith.constant 0 : i32
    return %arg0, %c0_i32 : i32, i32
  }
  func.func @transform_2(%arg0: i32, %arg1: i32) -> (i32, i32) {
    %c0_i32 = arith.constant 0 : i32
    %c0_i32_0 = arith.constant 0 : i32
    return %arg0, %c0_i32 : i32, i32
  }
}

module attributes {stable_mosaic.version = 11 : i64} {
  func.func @_norm_kernel(%arg0: i32, %arg1: i32, %arg2: memref<8x256xf32, #tpu.memory_space<vmem>>, %arg3: memref<8x1xf32, #tpu.memory_space<vmem>>, %arg4: memref<8x1xf32, #tpu.memory_space<vmem>>, %arg5: memref<8x1xf32, #tpu.memory_space<vmem>>, %arg6: memref<8x1xf32, #tpu.memory_space<vmem>>, %arg7: memref<8x256xf32, #tpu.memory_space<vmem>>) attributes {dimension_semantics = [#tpu.dimension_semantics<parallel>, #tpu.dimension_semantics<parallel>], iteration_bounds = array<i64: 1, 1>, scalar_prefetch = 0 : i64, scratch_operands = 0 : i64, tpu.core_type = #tpu.core_type<tc>, window_params = [{transform_indices = @transform_0, window_bounds = array<i64: 8, 256>}, {transform_indices = @transform_1, window_bounds = array<i64: 8, 1>}, {transform_indices = @transform_2, window_bounds = array<i64: 8, 1>}, {transform_indices = @transform_3, window_bounds = array<i64: 8, 1>}, {transform_indices = @transform_4, window_bounds = array<i64: 8, 1>}, {transform_indices = @transform_5, window_bounds = array<i64: 8, 256>}]} {
    %c0 = arith.constant 0 : index
    %c0_0 = arith.constant 0 : index
    %0 = vector.load %arg4[%c0, %c0_0] : memref<8x1xf32, #tpu.memory_space<vmem>>, vector<8x1xf32>
    %cst = arith.constant 0.000000e+00 : f32
    %1 = vector.broadcast %cst : f32 to vector<8x1xf32>
    %2 = arith.maximumf %0, %1 : vector<8x1xf32>
    %cst_1 = arith.constant 9.99999974E-6 : f32
    %3 = vector.broadcast %cst_1 : f32 to vector<8x1xf32>
    %4 = arith.addf %2, %3 : vector<8x1xf32>
    %5 = math.rsqrt %4 : vector<8x1xf32>
    %c0_2 = arith.constant 0 : index
    %c0_3 = arith.constant 0 : index
    %6 = vector.load %arg5[%c0_2, %c0_3] : memref<8x1xf32, #tpu.memory_space<vmem>>, vector<8x1xf32>
    %7 = arith.mulf %5, %6 : vector<8x1xf32>
    %c0_4 = arith.constant 0 : index
    %c0_5 = arith.constant 0 : index
    %8 = vector.load %arg3[%c0_4, %c0_5] : memref<8x1xf32, #tpu.memory_space<vmem>>, vector<8x1xf32>
    %9 = arith.mulf %8, %7 : vector<8x1xf32>
    %c0_6 = arith.constant 0 : index
    %c0_7 = arith.constant 0 : index
    %10 = vector.load %arg6[%c0_6, %c0_7] : memref<8x1xf32, #tpu.memory_space<vmem>>, vector<8x1xf32>
    %11 = arith.subf %9, %10 : vector<8x1xf32>
    %c0_8 = arith.constant 0 : index
    %c0_9 = arith.constant 0 : index
    %12 = vector.load %arg2[%c0_8, %c0_9] : memref<8x256xf32, #tpu.memory_space<vmem>>, vector<8x256xf32>
    %13 = vector.broadcast %7 : vector<8x1xf32> to vector<8x256xf32>
    %14 = arith.mulf %12, %13 : vector<8x256xf32>
    %15 = vector.broadcast %11 : vector<8x1xf32> to vector<8x256xf32>
    %16 = arith.subf %14, %15 : vector<8x256xf32>
    %c0_10 = arith.constant 0 : index
    %c0_11 = arith.constant 0 : index
    %17 = vector.load %arg7[%c0_10, %c0_11] : memref<8x256xf32, #tpu.memory_space<vmem>>, vector<8x256xf32>
    tpu.vector_store %arg7[%c0_10, %c0_11], %16 {strides = array<i32>} : memref<8x256xf32, #tpu.memory_space<vmem>>, vector<8x256xf32>,
    return
  }
  func.func @transform_0(%arg0: i32, %arg1: i32) -> (i32, i32) {
    %c0_i32 = arith.constant 0 : i32
    return %arg0, %arg1 : i32, i32
  }
  func.func @transform_1(%arg0: i32, %arg1: i32) -> (i32, i32) {
    %c0_i32 = arith.constant 0 : i32
    %c0_i32_0 = arith.constant 0 : i32
    return %arg0, %c0_i32 : i32, i32
  }
  func.func @transform_2(%arg0: i32, %arg1: i32) -> (i32, i32) {
    %c0_i32 = arith.constant 0 : i32
    %c0_i32_0 = arith.constant 0 : i32
    return %arg0, %c0_i32 : i32, i32
  }
  func.func @transform_3(%arg0: i32, %arg1: i32) -> (i32, i32) {
    %c0_i32 = arith.constant 0 : i32
    %c0_i32_0 = arith.constant 0 : i32
    return %arg0, %c0_i32 : i32, i32
  }
  func.func @transform_4(%arg0: i32, %arg1: i32) -> (i32, i32) {
    %c0_i32 = arith.constant 0 : i32
    %c0_i32_0 = arith.constant 0 : i32
    return %arg0, %c0_i32 : i32, i32
  }
  func.func @transform_5(%arg0: i32, %arg1: i32) -> (i32, i32) {
    %c0_i32 = arith.constant 0 : i32
    return %arg0, %arg1 : i32, i32
  }
}

</mosaic_0001>

<llo_original>
// kernel: my_bn_forward.2
$region0: #{my_bn_forward.2}
  #allocation0 [shape = 'u32[]', space=smem, size = 0x4, offset = 0x4, fixed_abs, tag = 'smem constant byte address 0x4 - core index']
  #allocation1 [shape = 'u32[144,128]{1,0:T(1,128)}', space=vmem, size = 0x12000, scoped, tag = 'internal scratch']
  %s0 = inlined_call_operand.vmem [shape: f32[8,256], index: 0, kind: input, shape index: {}]
  %s1 = inlined_call_operand.vmem [shape: f32[8,1], index: 1, kind: output, shape index: {0}]
  %s2 = inlined_call_operand.vmem [shape: f32[8,1], index: 2, kind: output, shape index: {1}]
  %3 = xla_tuple %s1, %s2
  %s4 = sld [smem:[#allocation0]]
  $region26: #{my_bn_forward.2} parent=0
    _
  %s6 = ssub.s32 1, %s4
  %s7 = scalar_select 0, %s6, %s4
  // Predicated region
  $region2: #{my_bn_forward.2} parent=0 // pred_check
    _
  $region3: #{my_bn_forward.2} parent=0 // pred_check_branch
    %9 = sbr.rel (0) target = $region5
  $region4: #{my_bn_forward.2} parent=0 // pred_region
    _
  $region5: #{my_bn_forward.2} parent=0 // pred_fallthru
    _
  %p10 = scmp.eq.s32.totalorder 0, 0
  // Predicated region
  $region6: #{my_bn_forward.2} parent=0 // pred_check
    %p11 = pneg %p10
  $region7: #{my_bn_forward.2} parent=0 // pred_check_branch
    %13 = sbr.rel (%p11) target = $region9
  $region8: #{my_bn_forward.2} parent=0 // pred_region
    %vm14 = vcmask 7168
    %15 = vst.msk [vmem:[%s1] sm:$0xff] %vm14, 0.0
    %16 = vst.msk [vmem:[%s2] sm:$0xff] %vm14, 0.0
  $region9: #{my_bn_forward.2} parent=0 // pred_fallthru
    _
  %v17 = vld [vmem:[%s0] sm:$0xff]
  %v18 = vld [vmem:[%s0 + $0x8] sm:$0xff]
  %v19 = vld [vmem:[%s1] sm:$0xff]
  %v20 = vadd.f32 %v17, %v18
  %21 = vadd.xlane.f32.xlu0 %v20
  %v22 = vpop.xlane.xlu0 %21
  %v23 = vadd.f32 %v19, %v22
  %vm24 = vcmask 7168
  %25 = vst.msk [vmem:[%s1] sm:$0xff] %vm24, %v23
  %v26 = vld [vmem:[%s2] sm:$0xff]
  %v27 = vmul.f32 %v17, %v17
  %v28 = vmul.f32 %v18, %v18
  %v29 = vadd.f32 %v27, %v28
  %30 = vadd.xlane.f32.xlu0 %v29
  %v31 = vpop.xlane.xlu0 %30
  %v32 = vadd.f32 %v26, %v31
  %33 = vst.msk [vmem:[%s2] sm:$0xff] %vm24, %v32
  // Predicated region
  $region10: #{my_bn_forward.2} parent=0 // pred_check
    _
  $region11: #{my_bn_forward.2} parent=0 // pred_check_branch
    %35 = sbr.rel (0) target = $region13
  $region12: #{my_bn_forward.2} parent=0 // pred_region
    _
  $region13: #{my_bn_forward.2} parent=0 // pred_fallthru
    _
  // Predicated region
  $region14: #{my_bn_forward.2} parent=0 // pred_check
    _
  $region15: #{my_bn_forward.2} parent=0 // pred_check_branch
    %37 = sbr.rel (0) target = $region17
  $region16: #{my_bn_forward.2} parent=0 // pred_region
    _
  $region17: #{my_bn_forward.2} parent=0 // pred_fallthru
    _
  // Predicated region
  $region18: #{my_bn_forward.2} parent=0 // pred_check
    _
  $region19: #{my_bn_forward.2} parent=0 // pred_check_branch
    %39 = sbr.rel (0) target = $region21
  $region20: #{my_bn_forward.2} parent=0 // pred_region
    _
  $region21: #{my_bn_forward.2} parent=0 // pred_fallthru
    _
  // Predicated region
  $region22: #{my_bn_forward.2} parent=0 // pred_check
    _
  $region23: #{my_bn_forward.2} parent=0 // pred_check_branch
    %41 = sbr.rel (0) target = $region25
  $region24: #{my_bn_forward.2} parent=0 // pred_region
    _
  $region25: #{my_bn_forward.2} parent=0 // pred_fallthru
    _

// kernel: my_bn_forward.3
$region0: #{my_bn_forward.3}
  #allocation0 [shape = 'u32[]', space=smem, size = 0x4, offset = 0x4, fixed_abs, tag = 'smem constant byte address 0x4 - core index']
  #allocation1 [shape = 'u32[144,128]{1,0:T(1,128)}', space=vmem, size = 0x12000, scoped, tag = 'internal scratch']
  %s0 = inlined_call_operand.vmem [shape: f32[8,256], index: 0, kind: input, shape index: {}]
  %s1 = inlined_call_operand.vmem [shape: f32[8,1], index: 1, kind: input, shape index: {}]
  %s2 = inlined_call_operand.vmem [shape: f32[8,1], index: 2, kind: input, shape index: {}]
  %s3 = inlined_call_operand.vmem [shape: f32[8,1], index: 3, kind: input, shape index: {}]
  %s4 = inlined_call_operand.vmem [shape: f32[8,1], index: 4, kind: input, shape index: {}]
  %s5 = inlined_call_operand.vmem [shape: f32[8,256], index: 5, kind: output, shape index: {}]
  %s6 = sld [smem:[#allocation0]]
  $region30: #{my_bn_forward.3} parent=0
    _
  %s8 = ssub.s32 1, %s6
  %s9 = scalar_select 0, %s8, %s6
  // Predicated region
  $region2: #{my_bn_forward.3} parent=0 // pred_check
    _
  $region3: #{my_bn_forward.3} parent=0 // pred_check_branch
    %11 = sbr.rel (0) target = $region5
  $region4: #{my_bn_forward.3} parent=0 // pred_region
    _
  $region5: #{my_bn_forward.3} parent=0 // pred_fallthru
    _
  // Predicated region
  $region6: #{my_bn_forward.3} parent=0 // pred_check
    _
  $region7: #{my_bn_forward.3} parent=0 // pred_check_branch
    %13 = sbr.rel (0) target = $region9
  $region8: #{my_bn_forward.3} parent=0 // pred_region
    _
  $region9: #{my_bn_forward.3} parent=0 // pred_fallthru
    _
  // Predicated region
  $region10: #{my_bn_forward.3} parent=0 // pred_check
    _
  $region11: #{my_bn_forward.3} parent=0 // pred_check_branch
    %15 = sbr.rel (0) target = $region13
  $region12: #{my_bn_forward.3} parent=0 // pred_region
    _
  $region13: #{my_bn_forward.3} parent=0 // pred_fallthru
    _
  // Predicated region
  $region14: #{my_bn_forward.3} parent=0 // pred_check
    _
  $region15: #{my_bn_forward.3} parent=0 // pred_check_branch
    %17 = sbr.rel (0) target = $region17
  $region16: #{my_bn_forward.3} parent=0 // pred_region
    _
  $region17: #{my_bn_forward.3} parent=0 // pred_fallthru
    _
  // Predicated region
  $region18: #{my_bn_forward.3} parent=0 // pred_check
    _
  $region19: #{my_bn_forward.3} parent=0 // pred_check_branch
    %19 = sbr.rel (0) target = $region21
  $region20: #{my_bn_forward.3} parent=0 // pred_region
    _
  $region21: #{my_bn_forward.3} parent=0 // pred_fallthru
    _
  %v20 = vld [vmem:[%s2] sm:$0xff]
  %v21 = vmax.f32 %v20, 0.0
  %v22 = vadd.f32 %v21, 1e-05
  %v23 = vrsqrt.pop %v22
  %v24 = vld [vmem:[%s3] sm:$0xff]
  %v25 = vmul.f32 %v23, %v24
  %v26 = vld [vmem:[%s1] sm:$0xff]
  %v27 = vmul.f32 %v26, %v25
  %v28 = vld [vmem:[%s4] sm:$0xff]
  %v29 = vsub.f32 %v27, %v28
  %v30 = vld [vmem:[%s0] sm:$0xff]
  %v31 = vld [vmem:[%s0 + $0x8] sm:$0xff]
  %33 = vset.pattern.permute.xlu0 0
  %34 = vperm.xlu0 %33, %v25
  %v35 = vpop.permute.xlu0 %34
  %v37 = vmul.f32 %v30, %v35
  %v38 = vmul.f32 %v31, %v35
  %40 = vset.pattern.permute.xlu0 0
  %41 = vperm.xlu0 %40, %v29
  %v42 = vpop.permute.xlu0 %41
  %v44 = vsub.f32 %v37, %v42
  %v45 = vsub.f32 %v38, %v42
  %46 = vst [vmem:[%s5] sm:$0xff] %v44
  %47 = vst [vmem:[%s5 + $0x8] sm:$0xff] %v45
  // Predicated region
  $region22: #{my_bn_forward.3} parent=0 // pred_check
    _
  $region23: #{my_bn_forward.3} parent=0 // pred_check_branch
    %49 = sbr.rel (0) target = $region25
  $region24: #{my_bn_forward.3} parent=0 // pred_region
    _
  $region25: #{my_bn_forward.3} parent=0 // pred_fallthru
    _
  // Predicated region
  $region26: #{my_bn_forward.3} parent=0 // pred_check
    _
  $region27: #{my_bn_forward.3} parent=0 // pred_check_branch
    %51 = sbr.rel (0) target = $region29
  $region28: #{my_bn_forward.3} parent=0 // pred_region
    _
  $region29: #{my_bn_forward.3} parent=0 // pred_fallthru
    _

</llo_original>
